<compile_context>
chip_gen: v5e
topology: v5e:2x2
jax: 0.10.0
libtpu: 0.0.40
codegen_flags: <defaults>
</compile_context>

<pallas_src>
import jax
import jax.numpy as jnp
from jax import lax
from jax.experimental import pallas as pl
from jax.experimental.pallas import tpu as pltpu

EPS = 1e-5
C_IN = 2
C1 = 64       # conv1 output channels
C2 = 256      # conv2 output channels
FC_OUT = 64
FC_PAD = 128  # lane-dense output width (zero-padded fc columns)


def model3d_kernel(patches_ref, w1_ref, b1_ref, w2_ref, b2_ref,
                   wfc_ref, bfc_ref, out_ref):
    f32 = jnp.float32
    bf16 = jnp.bfloat16
    W1, tm, kc = patches_ref.shape

    # conv1 (+ bn0/bn1 folded into w1/b1) + ReLU: one small-K bf16 matmul over
    # all W1*tm rows; the per-output-position bias b1_ref accounts exactly for
    # the conv1 zero padding at the width boundaries.  Bias + ReLU + bf16 cast
    # are fused so no f32 h1 temporary survives.
    x = patches_ref[...].reshape(W1 * tm, kc)
    h1 = jnp.dot(x, w1_ref[...], preferred_element_type=f32).reshape(W1, tm, C1)
    h1 = jnp.maximum(h1 + b1_ref[...], 0.0).astype(bf16)           # (W1, tm, 64)

    # conv2 tap weights (bn2 folded), resident (64, 256) bf16 slabs.
    w2l = w2_ref[0]
    w2c = w2_ref[1]
    w2r = w2_ref[2]

    # conv2 + MaxPool2d(kernel=(1, W1)) as a running max over the conv-width
    # axis.  Bias add and ReLU are hoisted past the pool (bias shared across
    # positions, ReLU monotone -> exactly equivalent).  Boundary taps are
    # skipped instead of materializing a zero-padded copy of h1.
    pooled = None
    for o in range(W1):
        acc = jnp.dot(h1[o], w2c, preferred_element_type=f32)      # center tap
        if o > 0:                                                  # left tap
            acc = acc + jnp.dot(h1[o - 1], w2l, preferred_element_type=f32)
        if o < W1 - 1:                                             # right tap
            acc = acc + jnp.dot(h1[o + 1], w2r, preferred_element_type=f32)
        pooled = acc if pooled is None else jnp.maximum(pooled, acc)
    pooled = jnp.maximum(pooled + b2_ref[...], 0.0)                # (tm, 256)

    # fc (Dropout is identity in eval mode); output padded to 128 lanes so the
    # final store is lane-dense (no masked vst).
    out_ref[...] = (jnp.dot(pooled.astype(bf16), wfc_ref[...],
                            preferred_element_type=f32) + bfc_ref[...])


def _bn_fold(gamma, beta, mean, var):
    s = gamma / jnp.sqrt(var + EPS)
    t = beta - mean * s
    return s, t


def _vmem_budget_bytes():
    """Scoped-VMEM budget for this kernel, derived from the chip when possible."""
    cap = 64 * 1024 * 1024                     # conservative default (v7x physical)
    try:
        cap = int(getattr(pltpu.get_tpu_info(), "vmem_capacity_bytes", cap))
    except Exception:
        pass
    # ~40% of physical VMEM, hard-capped so v5e/v6e also stay well clear of
    # their limits; never below 16 MiB.
    return max(16 * 1024 * 1024, min(int(cap * 0.4), 48 * 1024 * 1024))


def _pick_tm(M, W1, budget):
    """VMEM-budget-driven M-row block size (sublane-aligned, >=2 grid steps)."""
    per_row = (2 * W1 * 128 * 2    # patches block: bf16, minor dim lane-padded, 2 bufs
               + W1 * 128 * 2      # h1 (bf16, 64 lanes padded to 128)
               + 4 * C2 * 4        # conv2 acc / pooled / fc temporaries (f32)
               + 2 * FC_PAD * 4)   # output block (f32), 2 buffers
    cap = max(8, budget // per_row)
    cap = min(cap, 2048)           # diminishing returns beyond this
    if M // 2 >= 8:
        cap = min(cap, M // 2)     # keep >= 2 grid steps (v7x has 2 TensorCores)
    cap = min(cap, M)
    for align in (16, 8):          # prefer bf16 (16), then f32 (8) sublane alignment
        for t in range(cap, 0, -1):
            if t % align == 0 and M % t == 0:
                return t
    return M                       # fallback: one full block (always legal)


def model3d_forward(x, p):
    B, C, H, W = x.shape
    assert C == C_IN
    M = B * H
    W1 = (W + 2 - 3) // 3 + 1                  # conv1 output width (stride 3, pad 1)
    budget = _vmem_budget_bytes()
    tm = _pick_tm(M, W1, budget)

    s0, t0 = _bn_fold(p['bn0_g'], p['bn0_b'], p['bn0_m'], p['bn0_v'])   # (2,)
    s1, t1 = _bn_fold(p['bn1_g'], p['bn1_b'], p['bn1_m'], p['bn1_v'])   # (64,)
    s2, t2 = _bn_fold(p['bn2_g'], p['bn2_b'], p['bn2_m'], p['bn2_v'])   # (256,)

    # ---- glue: NCHW -> (W1, M, 3*C) zero-padded im2col of the RAW input (bf16).
    xr = jnp.transpose(x, (0, 2, 3, 1)).reshape(M, W, C).astype(jnp.float32)
    zpad = jnp.zeros((M, 1, C), jnp.float32)
    xp = jnp.concatenate([zpad, xr, zpad], axis=1)[:, :3 * W1, :]   # (M, 3*W1, C)
    patches = jnp.transpose(xp.reshape(M, W1, 3 * C), (1, 0, 2)).astype(jnp.bfloat16)

    # conv1 weight as a (6, 64) bf16 matmul operand; bn0 scale and bn1 folded in.
    w1 = jnp.transpose(p['conv1_w'][:, :, 0, :], (2, 1, 0)).reshape(3 * C, C1)
    s0_row = jnp.tile(s0, 3)[:, None]                               # row idx k*C+c
    t0_row = jnp.tile(t0, 3)[:, None]
    w1f = (w1 * s0_row * s1[None, :]).astype(jnp.bfloat16)          # (6, 64)

    # Per-output-position conv1 bias: the bn0 shift only flows through taps
    # that land inside the un-padded input (PyTorch pads AFTER bn0 with zeros),
    # so fold it per conv-width position o.  Exact at the boundaries.
    pos = 3 * jnp.arange(W1)[:, None] + jnp.arange(3)[None, :]      # padded coords
    valid = ((pos >= 1) & (pos <= W)).astype(jnp.float32)           # (W1, 3)
    valid6 = jnp.repeat(valid, C, axis=1)                           # (W1, 6)
    shift = valid6 @ (w1 * t0_row)                                  # (W1, 64)
    b1f = ((p['conv1_b'][None, :] + shift) * s1[None, :]
           + t1[None, :])[:, None, :]                               # (W1, 1, 64)

    # conv2: three (64, 256) tap weights (bn2 folded), stacked for one BlockSpec.
    w2 = p['conv2_w'][:, :, 0, :]                                   # (256, 64, 3)
    w2f = (jnp.stack([w2[:, :, 0].T, w2[:, :, 1].T, w2[:, :, 2].T], axis=0)
           * s2[None, None, :]).astype(jnp.bfloat16)                # (3, 64, 256)
    b2f = (p['conv2_b'] * s2 + t2).reshape(1, C2)

    # fc, zero-padded to 128 output lanes for dense stores; bf16 operand.
    wfc = jnp.concatenate(
        [p['fc_w'].T, jnp.zeros((C2, FC_PAD - FC_OUT), jnp.float32)],
        axis=1).astype(jnp.bfloat16)                                # (256, 128)
    bfc = jnp.concatenate([p['fc_b'],
                           jnp.zeros((FC_PAD - FC_OUT,), jnp.float32)]).reshape(1, FC_PAD)

    flops = (2 * W1 * M * (3 * C) * C1
             + 2 * M * max(3 * W1 - 2, 1) * C1 * C2
             + 2 * M * C2 * FC_PAD)
    bytes_accessed = (patches.size * 2 + w1f.size * 2 + b1f.size * 4
                      + w2f.size * 2 + b2f.size * 4 + wfc.size * 2 + bfc.size * 4
                      + M * FC_PAD * 4)

    out = pl.pallas_call(
        model3d_kernel,
        out_shape=jax.ShapeDtypeStruct((M, FC_PAD), jnp.float32),
        grid=(M // tm,),
        in_specs=[
            pl.BlockSpec((W1, tm, 3 * C), lambda i: (0, i, 0)),   # patches tile
            pl.BlockSpec((3 * C, C1), lambda i: (0, 0)),          # w1 (resident)
            pl.BlockSpec((W1, 1, C1), lambda i: (0, 0, 0)),       # per-o conv1 bias
            pl.BlockSpec((3, C1, C2), lambda i: (0, 0, 0)),       # conv2 tap weights
            pl.BlockSpec((1, C2), lambda i: (0, 0)),              # conv2 bias
            pl.BlockSpec((C2, FC_PAD), lambda i: (0, 0)),         # fc w (padded)
            pl.BlockSpec((1, FC_PAD), lambda i: (0, 0)),          # fc bias
        ],
        out_specs=pl.BlockSpec((tm, FC_PAD), lambda i: (i, 0)),
        compiler_params=pltpu.CompilerParams(
            dimension_semantics=("parallel",),
            vmem_limit_bytes=budget),
        cost_estimate=pl.CostEstimate(flops=flops, transcendentals=0,
                                      bytes_accessed=bytes_accessed),
    )(patches, w1f, b1f, w2f, b2f, wfc, bfc)

    # glue: rows m = b*H + h -> (H, B, 64), matching squeeze + permute(2,0,1) + fc.
    return jnp.transpose(out[:, :FC_OUT].reshape(B, H, FC_OUT), (1, 0, 2))


def reference_forward(x, p):
    """Pure-JAX f32 reference with the original (unfolded) PyTorch semantics."""
    hp = lax.Precision.HIGHEST

    def bn(y, g, b, m, v):
        return ((y - m[None, :, None, None]) / jnp.sqrt(v + EPS)[None, :, None, None]
                * g[None, :, None, None] + b[None, :, None, None])

    y = bn(x, p['bn0_g'], p['bn0_b'], p['bn0_m'], p['bn0_v'])
    y = lax.conv_general_dilated(y, p['conv1_w'], window_strides=(1, 3),
                                 padding=((0, 0), (1, 1)),
                                 dimension_numbers=('NCHW', 'OIHW', 'NCHW'),
                                 precision=hp) + p['conv1_b'][None, :, None, None]
    y = jax.nn.relu(bn(y, p['bn1_g'], p['bn1_b'], p['bn1_m'], p['bn1_v']))
    y = lax.conv_general_dilated(y, p['conv2_w'], window_strides=(1, 1),
                                 padding=((0, 0), (1, 1)),
                                 dimension_numbers=('NCHW', 'OIHW', 'NCHW'),
                                 precision=hp) + p['conv2_b'][None, :, None, None]
    y = jax.nn.relu(bn(y, p['bn2_g'], p['bn2_b'], p['bn2_m'], p['bn2_v']))
    y = jnp.max(y, axis=3)                    # MaxPool2d((1, W')) -> (B, 256, H)
    y = jnp.transpose(y, (2, 0, 1))           # squeeze + permute(2, 0, 1)
    return jnp.einsum('hbc,oc->hbo', y, p['fc_w'], precision=hp) + p['fc_b']


if __name__ == "__main__":
    key = jax.random.PRNGKey(0)
    k = jax.random.split(key, 8)
    B, H, W = 4, 8, 12                         # H == Tx = 8, small width

    p = {
        'bn0_g': jnp.array([1.0, 0.9], jnp.float32),
        'bn0_b': jnp.array([0.1, -0.1], jnp.float32),
        'bn0_m': jnp.array([0.05, -0.05], jnp.float32),
        'bn0_v': jnp.array([1.2, 0.8], jnp.float32),
        'conv1_w': jax.random.normal(k[0], (64, 2, 1, 3), jnp.float32) / jnp.sqrt(6.0),
        'conv1_b': 0.05 * jax.random.normal(k[1], (64,), jnp.float32),
        'bn1_g': 1.0 + 0.01 * jnp.arange(64, dtype=jnp.float32),
        'bn1_b': 0.02 * jnp.arange(64, dtype=jnp.float32) - 0.3,
        'bn1_m': 0.01 * jnp.arange(64, dtype=jnp.float32) - 0.2,
        'bn1_v': 1.0 + 0.005 * jnp.arange(64, dtype=jnp.float32),
        'conv2_w': jax.random.normal(k[2], (256, 64, 1, 3), jnp.float32) / jnp.sqrt(192.0),
        'conv2_b': 0.05 * jax.random.normal(k[3], (256,), jnp.float32),
        'bn2_g': 1.0 + 0.002 * jnp.arange(256, dtype=jnp.float32),
        'bn2_b': 0.004 * jnp.arange(256, dtype=jnp.float32) - 0.4,
        'bn2_m': 0.003 * jnp.arange(256, dtype=jnp.float32) - 0.3,
        'bn2_v': 1.0 + 0.001 * jnp.arange(256, dtype=jnp.float32),
        'fc_w': jax.random.normal(k[4], (64, 256), jnp.float32) / 16.0,
        'fc_b': 0.05 * jax.random.normal(k[5], (64,), jnp.float32),
    }
    x = jax.random.normal(k[6], (B, 2, H, W), jnp.float32)

    out = jax.block_until_ready(model3d_forward(x, p))
    ref = jax.block_until_ready(reference_forward(x, p))

    assert out.shape == (H, B, 64), out.shape
    # Tolerance reflects the deliberate bf16-operand / f32-accumulate trade-off
    # on the conv1, conv2 and fc matmuls (reference is full f32 HIGHEST precision).
    err = float(jnp.max(jnp.abs(out - ref)))
    if err < 5e-2:
        print("KERNEL_OK")
    else:
        print(f"MISMATCH max_abs_err={err}")
</pallas_src>

<mosaic_0001>
module attributes {stable_mosaic.version = 11 : i64} {
  func.func @model3d_kernel(%arg0: i32, %arg1: memref<4x16x6xbf16, #tpu.memory_space<vmem>>, %arg2: memref<6x64xbf16, #tpu.memory_space<vmem>>, %arg3: memref<4x1x64xf32, #tpu.memory_space<vmem>>, %arg4: memref<3x64x256xbf16, #tpu.memory_space<vmem>>, %arg5: memref<1x256xf32, #tpu.memory_space<vmem>>, %arg6: memref<256x128xbf16, #tpu.memory_space<vmem>>, %arg7: memref<1x128xf32, #tpu.memory_space<vmem>>, %arg8: memref<16x128xf32, #tpu.memory_space<vmem>>) attributes {dimension_semantics = [#tpu.dimension_semantics<parallel>], iteration_bounds = array<i64: 2>, scalar_prefetch = 0 : i64, scratch_operands = 0 : i64, tpu.core_type = #tpu.core_type<tc>, window_params = [{transform_indices = @transform_0, window_bounds = array<i64: 4, 16, 6>}, {pipeline_mode = #tpu.pipeline_mode<synchronous>, transform_indices = @transform_1, window_bounds = array<i64: 6, 64>}, {pipeline_mode = #tpu.pipeline_mode<synchronous>, transform_indices = @transform_2, window_bounds = array<i64: 4, 1, 64>}, {pipeline_mode = #tpu.pipeline_mode<synchronous>, transform_indices = @transform_3, window_bounds = array<i64: 3, 64, 256>}, {pipeline_mode = #tpu.pipeline_mode<synchronous>, transform_indices = @transform_4, window_bounds = array<i64: 1, 256>}, {pipeline_mode = #tpu.pipeline_mode<synchronous>, transform_indices = @transform_5, window_bounds = array<i64: 256, 128>}, {pipeline_mode = #tpu.pipeline_mode<synchronous>, transform_indices = @transform_6, window_bounds = array<i64: 1, 128>}, {transform_indices = @transform_7, window_bounds = array<i64: 16, 128>}]} {
    %c0 = arith.constant 0 : index
    %c0_0 = arith.constant 0 : index
    %c0_1 = arith.constant 0 : index
    %0 = vector.load %arg1[%c0, %c0_0, %c0_1] : memref<4x16x6xbf16, #tpu.memory_space<vmem>>, vector<4x16x6xbf16>
    %1 = vector.shape_cast %0 : vector<4x16x6xbf16> to vector<64x6xbf16>
    %c0_2 = arith.constant 0 : index
    %c0_3 = arith.constant 0 : index
    %2 = vector.load %arg2[%c0_2, %c0_3] : memref<6x64xbf16, #tpu.memory_space<vmem>>, vector<6x64xbf16>
    %cst = arith.constant dense<0.000000e+00> : vector<64x64xf32>
    %3 = tpu.matmul %1, %2, %cst {dimension_numbers = #tpu.dot_dimension_numbers<[1], [0], [0], [1], [0, 0, 1, 1], [], []>} : vector<64x6xbf16>, vector<6x64xbf16>, vector<64x64xf32> -> vector<64x64xf32>
    %4 = vector.shape_cast %3 : vector<64x64xf32> to vector<4x16x64xf32>
    %c0_4 = arith.constant 0 : index
    %c0_5 = arith.constant 0 : index
    %c0_6 = arith.constant 0 : index
    %5 = vector.load %arg3[%c0_4, %c0_5, %c0_6] : memref<4x1x64xf32, #tpu.memory_space<vmem>>, vector<4x1x64xf32>
    %6 = vector.broadcast %5 : vector<4x1x64xf32> to vector<4x16x64xf32>
    %7 = arith.addf %4, %6 : vector<4x16x64xf32>
    %cst_7 = arith.constant 0.000000e+00 : f32
    %8 = vector.broadcast %cst_7 : f32 to vector<4x16x64xf32>
    %9 = arith.maximumf %7, %8 : vector<4x16x64xf32>
    %10 = arith.truncf %9 : vector<4x16x64xf32> to vector<4x16x64xbf16>
    %c0_8 = arith.constant 0 : index
    %c0_9 = arith.constant 0 : index
    %c0_10 = arith.constant 0 : index
    %11 = vector.load %arg4[%c0_8, %c0_9, %c0_10] : memref<3x64x256xbf16, #tpu.memory_space<vmem>>, vector<1x64x256xbf16>
    %12 = vector.shape_cast %11 : vector<1x64x256xbf16> to vector<64x256xbf16>
    %c1 = arith.constant 1 : index
    %c0_11 = arith.constant 0 : index
    %c0_12 = arith.constant 0 : index
    %13 = vector.load %arg4[%c1, %c0_11, %c0_12] : memref<3x64x256xbf16, #tpu.memory_space<vmem>>, vector<1x64x256xbf16>
    %14 = vector.shape_cast %13 : vector<1x64x256xbf16> to vector<64x256xbf16>
    %c2 = arith.constant 2 : index
    %c0_13 = arith.constant 0 : index
    %c0_14 = arith.constant 0 : index
    %15 = vector.load %arg4[%c2, %c0_13, %c0_14] : memref<3x64x256xbf16, #tpu.memory_space<vmem>>, vector<1x64x256xbf16>
    %16 = vector.shape_cast %15 : vector<1x64x256xbf16> to vector<64x256xbf16>
    %17 = vector.extract_strided_slice %10 {offsets = [0, 0, 0], sizes = [1, 16, 64], strides = [1, 1, 1]} : vector<4x16x64xbf16> to vector<1x16x64xbf16>
    %18 = vector.shape_cast %17 : vector<1x16x64xbf16> to vector<16x64xbf16>
    %cst_15 = arith.constant dense<0.000000e+00> : vector<16x256xf32>
    %19 = tpu.matmul %18, %14, %cst_15 {dimension_numbers = #tpu.dot_dimension_numbers<[1], [0], [0], [1], [0, 0, 1, 1], [], []>} : vector<16x64xbf16>, vector<64x256xbf16>, vector<16x256xf32> -> vector<16x256xf32>
    %20 = vector.extract_strided_slice %10 {offsets = [1, 0, 0], sizes = [1, 16, 64], strides = [1, 1, 1]} : vector<4x16x64xbf16> to vector<1x16x64xbf16>
    %21 = vector.shape_cast %20 : vector<1x16x64xbf16> to vector<16x64xbf16>
    %cst_16 = arith.constant dense<0.000000e+00> : vector<16x256xf32>
    %22 = tpu.matmul %21, %16, %cst_16 {dimension_numbers = #tpu.dot_dimension_numbers<[1], [0], [0], [1], [0, 0, 1, 1], [], []>} : vector<16x64xbf16>, vector<64x256xbf16>, vector<16x256xf32> -> vector<16x256xf32>
    %23 = arith.addf %19, %22 : vector<16x256xf32>
    %24 = vector.extract_strided_slice %10 {offsets = [1, 0, 0], sizes = [1, 16, 64], strides = [1, 1, 1]} : vector<4x16x64xbf16> to vector<1x16x64xbf16>
    %25 = vector.shape_cast %24 : vector<1x16x64xbf16> to vector<16x64xbf16>
    %cst_17 = arith.constant dense<0.000000e+00> : vector<16x256xf32>
    %26 = tpu.matmul %25, %14, %cst_17 {dimension_numbers = #tpu.dot_dimension_numbers<[1], [0], [0], [1], [0, 0, 1, 1], [], []>} : vector<16x64xbf16>, vector<64x256xbf16>, vector<16x256xf32> -> vector<16x256xf32>
    %27 = vector.extract_strided_slice %10 {offsets = [0, 0, 0], sizes = [1, 16, 64], strides = [1, 1, 1]} : vector<4x16x64xbf16> to vector<1x16x64xbf16>
    %28 = vector.shape_cast %27 : vector<1x16x64xbf16> to vector<16x64xbf16>
    %cst_18 = arith.constant dense<0.000000e+00> : vector<16x256xf32>
    %29 = tpu.matmul %28, %12, %cst_18 {dimension_numbers = #tpu.dot_dimension_numbers<[1], [0], [0], [1], [0, 0, 1, 1], [], []>} : vector<16x64xbf16>, vector<64x256xbf16>, vector<16x256xf32> -> vector<16x256xf32>
    %30 = arith.addf %26, %29 : vector<16x256xf32>
    %31 = vector.extract_strided_slice %10 {offsets = [2, 0, 0], sizes = [1, 16, 64], strides = [1, 1, 1]} : vector<4x16x64xbf16> to vector<1x16x64xbf16>
    %32 = vector.shape_cast %31 : vector<1x16x64xbf16> to vector<16x64xbf16>
    %cst_19 = arith.constant dense<0.000000e+00> : vector<16x256xf32>
    %33 = tpu.matmul %32, %16, %cst_19 {dimension_numbers = #tpu.dot_dimension_numbers<[1], [0], [0], [1], [0, 0, 1, 1], [], []>} : vector<16x64xbf16>, vector<64x256xbf16>, vector<16x256xf32> -> vector<16x256xf32>
    %34 = arith.addf %30, %33 : vector<16x256xf32>
    %35 = arith.maximumf %23, %34 : vector<16x256xf32>
    %36 = vector.extract_strided_slice %10 {offsets = [2, 0, 0], sizes = [1, 16, 64], strides = [1, 1, 1]} : vector<4x16x64xbf16> to vector<1x16x64xbf16>
    %37 = vector.shape_cast %36 : vector<1x16x64xbf16> to vector<16x64xbf16>
    %cst_20 = arith.constant dense<0.000000e+00> : vector<16x256xf32>
    %38 = tpu.matmul %37, %14, %cst_20 {dimension_numbers = #tpu.dot_dimension_numbers<[1], [0], [0], [1], [0, 0, 1, 1], [], []>} : vector<16x64xbf16>, vector<64x256xbf16>, vector<16x256xf32> -> vector<16x256xf32>
    %39 = vector.extract_strided_slice %10 {offsets = [1, 0, 0], sizes = [1, 16, 64], strides = [1, 1, 1]} : vector<4x16x64xbf16> to vector<1x16x64xbf16>
    %40 = vector.shape_cast %39 : vector<1x16x64xbf16> to vector<16x64xbf16>
    %cst_21 = arith.constant dense<0.000000e+00> : vector<16x256xf32>
    %41 = tpu.matmul %40, %12, %cst_21 {dimension_numbers = #tpu.dot_dimension_numbers<[1], [0], [0], [1], [0, 0, 1, 1], [], []>} : vector<16x64xbf16>, vector<64x256xbf16>, vector<16x256xf32> -> vector<16x256xf32>
    %42 = arith.addf %38, %41 : vector<16x256xf32>
    %43 = vector.extract_strided_slice %10 {offsets = [3, 0, 0], sizes = [1, 16, 64], strides = [1, 1, 1]} : vector<4x16x64xbf16> to vector<1x16x64xbf16>
    %44 = vector.shape_cast %43 : vector<1x16x64xbf16> to vector<16x64xbf16>
    %cst_22 = arith.constant dense<0.000000e+00> : vector<16x256xf32>
    %45 = tpu.matmul %44, %16, %cst_22 {dimension_numbers = #tpu.dot_dimension_numbers<[1], [0], [0], [1], [0, 0, 1, 1], [], []>} : vector<16x64xbf16>, vector<64x256xbf16>, vector<16x256xf32> -> vector<16x256xf32>
    %46 = arith.addf %42, %45 : vector<16x256xf32>
    %47 = arith.maximumf %35, %46 : vector<16x256xf32>
    %48 = vector.extract_strided_slice %10 {offsets = [3, 0, 0], sizes = [1, 16, 64], strides = [1, 1, 1]} : vector<4x16x64xbf16> to vector<1x16x64xbf16>
    %49 = vector.shape_cast %48 : vector<1x16x64xbf16> to vector<16x64xbf16>
    %cst_23 = arith.constant dense<0.000000e+00> : vector<16x256xf32>
    %50 = tpu.matmul %49, %14, %cst_23 {dimension_numbers = #tpu.dot_dimension_numbers<[1], [0], [0], [1], [0, 0, 1, 1], [], []>} : vector<16x64xbf16>, vector<64x256xbf16>, vector<16x256xf32> -> vector<16x256xf32>
    %51 = vector.extract_strided_slice %10 {offsets = [2, 0, 0], sizes = [1, 16, 64], strides = [1, 1, 1]} : vector<4x16x64xbf16> to vector<1x16x64xbf16>
    %52 = vector.shape_cast %51 : vector<1x16x64xbf16> to vector<16x64xbf16>
    %cst_24 = arith.constant dense<0.000000e+00> : vector<16x256xf32>
    %53 = tpu.matmul %52, %12, %cst_24 {dimension_numbers = #tpu.dot_dimension_numbers<[1], [0], [0], [1], [0, 0, 1, 1], [], []>} : vector<16x64xbf16>, vector<64x256xbf16>, vector<16x256xf32> -> vector<16x256xf32>
    %54 = arith.addf %50, %53 : vector<16x256xf32>
    %55 = arith.maximumf %47, %54 : vector<16x256xf32>
    %c0_25 = arith.constant 0 : index
    %c0_26 = arith.constant 0 : index
    %56 = vector.load %arg5[%c0_25, %c0_26] : memref<1x256xf32, #tpu.memory_space<vmem>>, vector<1x256xf32>
    %57 = vector.broadcast %56 : vector<1x256xf32> to vector<16x256xf32>
    %58 = arith.addf %55, %57 : vector<16x256xf32>
    %cst_27 = arith.constant 0.000000e+00 : f32
    %59 = vector.broadcast %cst_27 : f32 to vector<16x256xf32>
    %60 = arith.maximumf %58, %59 : vector<16x256xf32>
    %61 = arith.truncf %60 : vector<16x256xf32> to vector<16x256xbf16>
    %c0_28 = arith.constant 0 : index
    %c0_29 = arith.constant 0 : index
    %62 = vector.load %arg6[%c0_28, %c0_29] : memref<256x128xbf16, #tpu.memory_space<vmem>>, vector<256x128xbf16>
    %cst_30 = arith.constant dense<0.000000e+00> : vector<16x128xf32>
    %63 = tpu.matmul %61, %62, %cst_30 {dimension_numbers = #tpu.dot_dimension_numbers<[1], [0], [0], [1], [0, 0, 1, 1], [], []>} : vector<16x256xbf16>, vector<256x128xbf16>, vector<16x128xf32> -> vector<16x128xf32>
    %c0_31 = arith.constant 0 : index
    %c0_32 = arith.constant 0 : index
    %64 = vector.load %arg7[%c0_31, %c0_32] : memref<1x128xf32, #tpu.memory_space<vmem>>, vector<1x128xf32>
    %65 = vector.broadcast %64 : vector<1x128xf32> to vector<16x128xf32>
    %66 = arith.addf %63, %65 : vector<16x128xf32>
    %c0_33 = arith.constant 0 : index
    %c0_34 = arith.constant 0 : index
    %67 = vector.load %arg8[%c0_33, %c0_34] : memref<16x128xf32, #tpu.memory_space<vmem>>, vector<16x128xf32>
    tpu.vector_store %arg8[%c0_33, %c0_34], %66 {strides = array<i32>} : memref<16x128xf32, #tpu.memory_space<vmem>>, vector<16x128xf32>,
    return
  }
  func.func @transform_0(%arg0: i32) -> (i32, i32, i32) {
    %c0_i32 = arith.constant 0 : i32
    %c0_i32_0 = arith.constant 0 : i32
    %c0_i32_1 = arith.constant 0 : i32
    return %c0_i32, %arg0, %c0_i32_0 : i32, i32, i32
  }
  func.func @transform_1(%arg0: i32) -> (i32, i32) {
    %c0_i32 = arith.constant 0 : i32
    %c0_i32_0 = arith.constant 0 : i32
    %c0_i32_1 = arith.constant 0 : i32
    return %c0_i32, %c0_i32_0 : i32, i32
  }
  func.func @transform_2(%arg0: i32) -> (i32, i32, i32) {
    %c0_i32 = arith.constant 0 : i32
    %c0_i32_0 = arith.constant 0 : i32
    %c0_i32_1 = arith.constant 0 : i32
    %c0_i32_2 = arith.constant 0 : i32
    return %c0_i32, %c0_i32_0, %c0_i32_1 : i32, i32, i32
  }
  func.func @transform_3(%arg0: i32) -> (i32, i32, i32) {
    %c0_i32 = arith.constant 0 : i32
    %c0_i32_0 = arith.constant 0 : i32
    %c0_i32_1 = arith.constant 0 : i32
    %c0_i32_2 = arith.constant 0 : i32
    return %c0_i32, %c0_i32_0, %c0_i32_1 : i32, i32, i32
  }
  func.func @transform_4(%arg0: i32) -> (i32, i32) {
    %c0_i32 = arith.constant 0 : i32
    %c0_i32_0 = arith.constant 0 : i32
    %c0_i32_1 = arith.constant 0 : i32
    return %c0_i32, %c0_i32_0 : i32, i32
  }
  func.func @transform_5(%arg0: i32) -> (i32, i32) {
    %c0_i32 = arith.constant 0 : i32
    %c0_i32_0 = arith.constant 0 : i32
    %c0_i32_1 = arith.constant 0 : i32
    return %c0_i32, %c0_i32_0 : i32, i32
  }
  func.func @transform_6(%arg0: i32) -> (i32, i32) {
    %c0_i32 = arith.constant 0 : i32
    %c0_i32_0 = arith.constant 0 : i32
    %c0_i32_1 = arith.constant 0 : i32
    return %c0_i32, %c0_i32_0 : i32, i32
  }
  func.func @transform_7(%arg0: i32) -> (i32, i32) {
    %c0_i32 = arith.constant 0 : i32
    %c0_i32_0 = arith.constant 0 : i32
    return %arg0, %c0_i32 : i32, i32
  }
}

</mosaic_0001>

<llo_original>
// kernel: tpu_custom_call.1
$region0: #{tpu_custom_call.1}
  #allocation0 [shape = 'u32[]', space=smem, size = 0x4, offset = 0x4, fixed_abs, tag = 'smem constant byte address 0x4 - core index']
  #allocation1 [shape = 'u32[72,128]{1,0:T(1,128)}', space=vmem, size = 0x9000, scoped, tag = 'internal scratch']
  %s0 = inlined_call_operand.vmem [shape: bf16[4,32,6], index: 0, kind: input, shape index: {}]
  %s1 = inlined_call_operand.vmem [shape: bf16[6,64], index: 1, kind: input, shape index: {}]
  %s2 = inlined_call_operand.vmem [shape: f32[4,1,64], index: 2, kind: input, shape index: {}]
  %s3 = inlined_call_operand.hbm [shape: bf16[3,64,256], index: 3, kind: input, shape index: {}]
  %s4 = inlined_call_operand.vmem [shape: f32[1,256], index: 4, kind: input, shape index: {}]
  %s5 = inlined_call_operand.hbm [shape: bf16[256,128], index: 5, kind: input, shape index: {}]
  %s6 = inlined_call_operand.vmem [shape: f32[1,128], index: 6, kind: input, shape index: {}]
  %s7 = inlined_call_operand.hbm [shape: f32[32,128], index: 7, kind: output, shape index: {}]
  %s8 = sld [smem:[#allocation0]]
  $region110: #{tpu_custom_call.1} parent=0
    _
  %s10 = ssub.s32 1, %s8
  %s11 = scalar_select 0, %s10, %s8
  $region1: #{tpu_custom_call.1} parent=0
    #allocation2 [shape = 'u8[32768]{0}', space=vmem, size = 0x8000, scoped, tag = 'input window, operand 0']
    #allocation3 [shape = 'u8[98304]{0}', space=vmem, size = 0x18000, scoped, tag = 'input window, operand 3, single buffered']
    #allocation4 [shape = 's32[2]{0}', space=sflag, size = 0x8, scoped, tag = 'scoped memory for tpu_custom_call.1']
    #allocation5 [shape = 's32[2]{0}', space=sflag, size = 0x8, scoped, tag = 'scoped memory for tpu_custom_call.1']
    #allocation6 [shape = 'u8[65536]{0}', space=vmem, size = 0x10000, scoped, tag = 'input window, operand 5, single buffered']
    #allocation7 [shape = 's32[1]{0}', space=sflag, size = 0x4, scoped, tag = 'scoped memory for tpu_custom_call.1']
    #allocation8 [shape = 'u8[16384]{0}', space=vmem, size = 0x4000, scoped, tag = 'output window, operand 0']
    %12 = vsyncpa [#allocation4], 0
    %13 = vsyncpa [#allocation7], 0
    %14 = vsyncpa [#allocation5], 0
    %s15 = scalar_lea.sflag [#allocation5], 1
    %16 = vsyncpa %s15, 0
    loop: start=0, step=1, limit=4
    $region2: #{tpu_custom_call.1} parent=1 // loop_pre_header
      _
    $region3: #{tpu_custom_call.1} parent=1 // loop_header
      %s18 = sphi 0, %s22
      %p19 = scmp.ge.s32.totalorder %s18, 4
      %s28 = sphi 0, %s30
      %s31 = sphi 0, %s28
      %s32 = sphi 0, %s31
      %s48 = sphi 0, %s32
      %s52 = sphi 0, %s52
      %s54 = sphi 0, %s52
      %s55 = sphi 0, %s54
      %s69 = sphi 0, %s55
      %s73 = sphi 0, %s73
      %s75 = sphi 0, %s73
      %s76 = sphi 0, %s75
      %s90 = sphi 0, %s76
      %s94 = sphi 0, %s94
      %s96 = sphi 0, %s94
      %s97 = sphi 0, %s96
      %s111 = sphi 0, %s97
      %s115 = sphi 0, %s115
      %s117 = sphi 0, %s115
      %s118 = sphi 0, %s117
      %s132 = sphi 0, %s118
      %s136 = sphi 0, %s136
      %s138 = sphi 0, %s136
      %s139 = sphi 0, %s138
      %s153 = sphi 0, %s139
      %s157 = sphi 0, %s157
      %s159 = sphi 0, %s157
      %s160 = sphi 0, %s159
      %s174 = sphi 0, %s160
      %s180 = sphi 0, %s182
      %s183 = sphi 0, %s180
      %s184 = sphi 0, %s183
      %s200 = sphi 0, %s184
    $region4: #{tpu_custom_call.1} parent=1 // loop_header_branch
      %21 = sbr.rel (%p19) target = $region8
    $region5: #{tpu_custom_call.1} parent=1 // loop_body
      %s23 = ssub.s32 %s18, 1
      %s24 = ssub.s32 %s18, 2
      %s25 = sadd.s32 %s18, 1
      %s26 = ssub.s32 %s18, %s25
      %p27 = scmp.eq.s32.totalorder %s26, 0
      %s29 = sadd.s32 %s28, 1
      %s30 = scalar_select %p27, %s28, %s29
      %p33 = pneg %p27
      %p34 = scmp.eq.s32.totalorder %s18, 1
      %p35 = por %p33, %p34
      %p36 = scmp.ne.s32.totalorder %s28, %s31
      %p37 = scmp.eq.s32.totalorder %s18, 0
      %p38 = por %p36, %p37
      %p39 = scmp.ne.s32.totalorder %s28, %s31
      %p40 = scmp.eq.s32.totalorder %s23, 1
      %p41 = por %p39, %p40
      %p42 = scmp.ne.s32.totalorder %s31, %s32
      %p43 = scmp.eq.s32.totalorder %s23, 0
      %p44 = por %p42, %p43
      %p45 = scmp.ne.s32.totalorder %s31, %s32
      %p46 = scmp.eq.s32.totalorder %s24, 1
      %p47 = por %p45, %p46
      %p49 = scmp.ne.s32.totalorder %s32, %s48
      %p50 = scmp.eq.s32.totalorder %s24, 0
      %p51 = por %p49, %p50
      %s53 = sadd.s32 %s52, 1
      %p56 = scmp.eq.s32.totalorder %s18, 1
      %p57 = scmp.ne.s32.totalorder %s52, %s54
      %p58 = scmp.eq.s32.totalorder %s18, 0
      %p59 = por %p57, %p58
      %p60 = scmp.ne.s32.totalorder %s52, %s54
      %p61 = scmp.eq.s32.totalorder %s23, 1
      %p62 = por %p60, %p61
      %p63 = scmp.ne.s32.totalorder %s54, %s55
      %p64 = scmp.eq.s32.totalorder %s23, 0
      %p65 = por %p63, %p64
      %p66 = scmp.ne.s32.totalorder %s54, %s55
      %p67 = scmp.eq.s32.totalorder %s24, 1
      %p68 = por %p66, %p67
      %p70 = scmp.ne.s32.totalorder %s55, %s69
      %p71 = scmp.eq.s32.totalorder %s24, 0
      %p72 = por %p70, %p71
      %s74 = sadd.s32 %s73, 1
      %p77 = scmp.eq.s32.totalorder %s18, 1
      %p78 = scmp.ne.s32.totalorder %s73, %s75
      %p79 = scmp.eq.s32.totalorder %s18, 0
      %p80 = por %p78, %p79
      %p81 = scmp.ne.s32.totalorder %s73, %s75
      %p82 = scmp.eq.s32.totalorder %s23, 1
      %p83 = por %p81, %p82
      %p84 = scmp.ne.s32.totalorder %s75, %s76
      %p85 = scmp.eq.s32.totalorder %s23, 0
      %p86 = por %p84, %p85
      %p87 = scmp.ne.s32.totalorder %s75, %s76
      %p88 = scmp.eq.s32.totalorder %s24, 1
      %p89 = por %p87, %p88
      %p91 = scmp.ne.s32.totalorder %s76, %s90
      %p92 = scmp.eq.s32.totalorder %s24, 0
      %p93 = por %p91, %p92
      %s95 = sadd.s32 %s94, 1
      %p98 = scmp.eq.s32.totalorder %s18, 1
      %p99 = scmp.ne.s32.totalorder %s94, %s96
      %p100 = scmp.eq.s32.totalorder %s18, 0
      %p101 = por %p99, %p100
      %p102 = scmp.ne.s32.totalorder %s94, %s96
      %p103 = scmp.eq.s32.totalorder %s23, 1
      %p104 = por %p102, %p103
      %p105 = scmp.ne.s32.totalorder %s96, %s97
      %p106 = scmp.eq.s32.totalorder %s23, 0
      %p107 = por %p105, %p106
      %p108 = scmp.ne.s32.totalorder %s96, %s97
      %p109 = scmp.eq.s32.totalorder %s24, 1
      %p110 = por %p108, %p109
      %p112 = scmp.ne.s32.totalorder %s97, %s111
      %p113 = scmp.eq.s32.totalorder %s24, 0
      %p114 = por %p112, %p113
      %s116 = sadd.s32 %s115, 1
      %p119 = scmp.eq.s32.totalorder %s18, 1
      %p120 = scmp.ne.s32.totalorder %s115, %s117
      %p121 = scmp.eq.s32.totalorder %s18, 0
      %p122 = por %p120, %p121
      %p123 = scmp.ne.s32.totalorder %s115, %s117
      %p124 = scmp.eq.s32.totalorder %s23, 1
      %p125 = por %p123, %p124
      %p126 = scmp.ne.s32.totalorder %s117, %s118
      %p127 = scmp.eq.s32.totalorder %s23, 0
      %p128 = por %p126, %p127
      %p129 = scmp.ne.s32.totalorder %s117, %s118
      %p130 = scmp.eq.s32.totalorder %s24, 1
      %p131 = por %p129, %p130
      %p133 = scmp.ne.s32.totalorder %s118, %s132
      %p134 = scmp.eq.s32.totalorder %s24, 0
      %p135 = por %p133, %p134
      %s137 = sadd.s32 %s136, 1
      %p140 = scmp.eq.s32.totalorder %s18, 1
      %p141 = scmp.ne.s32.totalorder %s136, %s138
      %p142 = scmp.eq.s32.totalorder %s18, 0
      %p143 = por %p141, %p142
      %p144 = scmp.ne.s32.totalorder %s136, %s138
      %p145 = scmp.eq.s32.totalorder %s23, 1
      %p146 = por %p144, %p145
      %p147 = scmp.ne.s32.totalorder %s138, %s139
      %p148 = scmp.eq.s32.totalorder %s23, 0
      %p149 = por %p147, %p148
      %p150 = scmp.ne.s32.totalorder %s138, %s139
      %p151 = scmp.eq.s32.totalorder %s24, 1
      %p152 = por %p150, %p151
      %p154 = scmp.ne.s32.totalorder %s139, %s153
      %p155 = scmp.eq.s32.totalorder %s24, 0
      %p156 = por %p154, %p155
      %s158 = sadd.s32 %s157, 1
      %p161 = scmp.eq.s32.totalorder %s18, 1
      %p162 = scmp.ne.s32.totalorder %s157, %s159
      %p163 = scmp.eq.s32.totalorder %s18, 0
      %p164 = por %p162, %p163
      %p165 = scmp.ne.s32.totalorder %s157, %s159
      %p166 = scmp.eq.s32.totalorder %s23, 1
      %p167 = por %p165, %p166
      %p168 = scmp.ne.s32.totalorder %s159, %s160
      %p169 = scmp.eq.s32.totalorder %s23, 0
      %p170 = por %p168, %p169
      %p171 = scmp.ne.s32.totalorder %s159, %s160
      %p172 = scmp.eq.s32.totalorder %s24, 1
      %p173 = por %p171, %p172
      %p175 = scmp.ne.s32.totalorder %s160, %s174
      %p176 = scmp.eq.s32.totalorder %s24, 0
      %p177 = por %p175, %p176
      %s178 = ssub.s32 %s18, %s25
      %p179 = scmp.eq.s32.totalorder %s178, 0
      %s181 = sadd.s32 %s180, 1
      %s182 = scalar_select %p179, %s180, %s181
      %p185 = pneg %p179
      %p186 = scmp.eq.s32.totalorder %s18, 1
      %p187 = por %p185, %p186
      %p188 = scmp.ne.s32.totalorder %s180, %s183
      %p189 = scmp.eq.s32.totalorder %s18, 0
      %p190 = por %p188, %p189
      %p191 = scmp.ne.s32.totalorder %s180, %s183
      %p192 = scmp.eq.s32.totalorder %s23, 1
      %p193 = por %p191, %p192
      %p194 = scmp.ne.s32.totalorder %s183, %s184
      %p195 = scmp.eq.s32.totalorder %s23, 0
      %p196 = por %p194, %p195
      %p197 = scmp.ne.s32.totalorder %s183, %s184
      %p198 = scmp.eq.s32.totalorder %s24, 1
      %p199 = por %p197, %p198
      %p201 = scmp.ne.s32.totalorder %s184, %s200
      %p202 = scmp.eq.s32.totalorder %s24, 0
      %p203 = por %p201, %p202
      %p204 = scmp.le.s32.totalorder 1, %s18
      %p205 = scmp.lt.s32.totalorder %s18, 3
      %p206 = pnand %p204, %p205
      %p207 = pneg %p206
      // Predicated region
      $region9: #{tpu_custom_call.1} parent=5 // pred_check
        _
      $region10: #{tpu_custom_call.1} parent=5 // pred_check_branch
        %209 = sbr.rel (%p206) target = $region12
      $region11: #{tpu_custom_call.1} parent=5 // pred_region
        %s210 = ssub.s32 %s18, 1
        // Predicated region
        $region13: #{tpu_custom_call.1} parent=11 // pred_check
          %p211 = pneg %p65
        $region14: #{tpu_custom_call.1} parent=11 // pred_check_branch
          %213 = sbr.rel (%p211) target = $region16
        $region15: #{tpu_custom_call.1} parent=11 // pred_region
          _
        $region16: #{tpu_custom_call.1} parent=11 // pred_fallthru
          _
        // Predicated region
        $region17: #{tpu_custom_call.1} parent=11 // pred_check
          %p214 = pneg %p86
        $region18: #{tpu_custom_call.1} parent=11 // pred_check_branch
          %216 = sbr.rel (%p214) target = $region20
        $region19: #{tpu_custom_call.1} parent=11 // pred_region
          _
        $region20: #{tpu_custom_call.1} parent=11 // pred_fallthru
          _
        // Predicated region
        $region21: #{tpu_custom_call.1} parent=11 // pred_check
          %p217 = pneg %p107
        $region22: #{tpu_custom_call.1} parent=11 // pred_check_branch
          %219 = sbr.rel (%p217) target = $region24
        $region23: #{tpu_custom_call.1} parent=11 // pred_region
          %221 = vsyncadd [#allocation4], 0
          %s222 = sshll.u32 %s3, 4
          %s223 = int_to_ptr.hbm [resolvable:$true] %s222
          %s224 = sshll.u32 [#allocation3], 4
          %s225 = int_to_ptr.vmem [resolvable:$true] %s224
          %230 = dma.hbm_to_vmem [thread:$0]  %s223, 3072, %s225, [#allocation4], 128, 128, 8
        $region24: #{tpu_custom_call.1} parent=11 // pred_fallthru
          _
        // Predicated region
        $region25: #{tpu_custom_call.1} parent=11 // pred_check
          %p231 = pneg %p128
        $region26: #{tpu_custom_call.1} parent=11 // pred_check_branch
          %233 = sbr.rel (%p231) target = $region28
        $region27: #{tpu_custom_call.1} parent=11 // pred_region
          _
        $region28: #{tpu_custom_call.1} parent=11 // pred_fallthru
          _
        // Predicated region
        $region29: #{tpu_custom_call.1} parent=11 // pred_check
          %p234 = pneg %p149
        $region30: #{tpu_custom_call.1} parent=11 // pred_check_branch
          %236 = sbr.rel (%p234) target = $region32
        $region31: #{tpu_custom_call.1} parent=11 // pred_region
          %238 = vsyncadd [#allocation7], 0
          %s239 = sshll.u32 %s5, 4
          %s240 = int_to_ptr.hbm [resolvable:$true] %s239
          %s241 = sshll.u32 [#allocation6], 4
          %s242 = int_to_ptr.vmem [resolvable:$true] %s241
          %247 = dma.hbm_to_vmem [thread:$0]  %s240, 2048, %s242, [#allocation7], 64, 64, 4
        $region32: #{tpu_custom_call.1} parent=11 // pred_fallthru
          _
        // Predicated region
        $region33: #{tpu_custom_call.1} parent=11 // pred_check
          %p248 = pneg %p170
        $region34: #{tpu_custom_call.1} parent=11 // pred_check_branch
          %250 = sbr.rel (%p248) target = $region36
        $region35: #{tpu_custom_call.1} parent=11 // pred_region
          _
        $region36: #{tpu_custom_call.1} parent=11 // pred_fallthru
          _
      $region12: #{tpu_custom_call.1} parent=5 // pred_fallthru
        _
      %p251 = scmp.lt.s32.totalorder %s18, 2
      // Predicated region
      $region37: #{tpu_custom_call.1} parent=5 // pred_check
        %p252 = pneg %p251
      $region38: #{tpu_custom_call.1} parent=5 // pred_check_branch
        %254 = sbr.rel (%p252) target = $region40
      $region39: #{tpu_custom_call.1} parent=5 // pred_region
        // Predicated region
        $region41: #{tpu_custom_call.1} parent=39 // pred_check
          %p255 = pneg %p38
        $region42: #{tpu_custom_call.1} parent=39 // pred_check_branch
          %257 = sbr.rel (%p255) target = $region44
        $region43: #{tpu_custom_call.1} parent=39 // pred_region
          %s258 = sand.u32 %s28, 1
          %s259 = sand.u32 %s28, 1
          %s260 = smul.addr %s259, 32
          %s261 = scalar_lea.vmem [#allocation2], %s260
          %s262 = smul.u32 2, %s18
          %s263 = smul.addr %s262, 4
          %s264 = scalar_lea.vmem %s0, %s263
          // Predicated region
          $region45: #{tpu_custom_call.1} parent=43 // pred_check
            _
          $region46: #{tpu_custom_call.1} parent=43 // pred_check_branch
            %266 = sbr.rel (0) target = $region48
          $region47: #{tpu_custom_call.1} parent=43 // pred_region
            // Predicated region
            $region49: #{tpu_custom_call.1} parent=47 // pred_check
              _
            $region50: #{tpu_custom_call.1} parent=47 // pred_check_branch
              %268 = sbr.rel target = $region52
            $region51: #{tpu_custom_call.1} parent=47 // pred_region
              // Predicated region
              $region64: #{tpu_custom_call.1} parent=51 // pred_check
                _
              $region65: #{tpu_custom_call.1} parent=51 // pred_check_branch
                %298 = sbr.rel (0) target = $region67
              $region66: #{tpu_custom_call.1} parent=51 // pred_region
                loop: start=0, step=1, limit=1
                $region68: #{tpu_custom_call.1} parent=66 // loop_pre_header
                  _
                $region69: #{tpu_custom_call.1} parent=66 // loop_header
                  %s300 = sphi 0, %s304
                  %p301 = scmp.ge.s32.totalorder %s300, 1
                  %s305 = sphi %s264, %s264
                  %s306 = sphi %s261, %s261
                $region70: #{tpu_custom_call.1} parent=66 // loop_header_branch
                  %303 = sbr.rel (%p301) target = $region74
                $region71: #{tpu_custom_call.1} parent=66 // loop_body
                  _
                $region72: #{tpu_custom_call.1} parent=66 // loop_footer
                  %s304 = sadd.s32 1, %s300
                $region73: #{tpu_custom_call.1} parent=66 // loop_footer_branch
                  %299 = sbr.rel target = $region69
                $region74: #{tpu_custom_call.1} parent=66 // loop_exit
                  _
                %s308 = ssub.s32 16, 1
                loop: start=0, step=1, limit=1
                $region75: #{tpu_custom_call.1} parent=66 // loop_pre_header
                  _
                $region76: #{tpu_custom_call.1} parent=66 // loop_header
                  %s310 = sphi 0, %s314
                  %p311 = scmp.ge.s32.totalorder %s310, 1
                  %s315 = sphi %s264, %s264
                  %s316 = sphi %s261, %s261
                $region77: #{tpu_custom_call.1} parent=66 // loop_header_branch
                  %313 = sbr.rel (%p311) target = $region81
                $region78: #{tpu_custom_call.1} parent=66 // loop_body
                  %v317 = vld [vmem:[%s315] sm:%s308]
                  %318 = vst [vmem:[%s316] sm:%s308] %v317
                  %v319 = vld [vmem:[%s315 + $0x4] sm:%s308]
                  %320 = vst [vmem:[%s316 + $0x4] sm:%s308] %v319
                  %v321 = vld [vmem:[%s315 + $0x10] sm:%s308]
                  %322 = vst [vmem:[%s316 + $0x8] sm:%s308] %v321
                  %v323 = vld [vmem:[%s315 + $0x14] sm:%s308]
                  %324 = vst [vmem:[%s316 + $0xc] sm:%s308] %v323
                  %v325 = vld [vmem:[%s315 + $0x20] sm:%s308]
                  %326 = vst [vmem:[%s316 + $0x10] sm:%s308] %v325
                  %v327 = vld [vmem:[%s315 + $0x24] sm:%s308]
                  %328 = vst [vmem:[%s316 + $0x14] sm:%s308] %v327
                  %v329 = vld [vmem:[%s315 + $0x30] sm:%s308]
                  %330 = vst [vmem:[%s316 + $0x18] sm:%s308] %v329
                  %v331 = vld [vmem:[%s315 + $0x34] sm:%s308]
                  %332 = vst [vmem:[%s316 + $0x1c] sm:%s308] %v331
                $region79: #{tpu_custom_call.1} parent=66 // loop_footer
                  %s314 = sadd.s32 1, %s310
                $region80: #{tpu_custom_call.1} parent=66 // loop_footer_branch
                  %309 = sbr.rel target = $region76
                $region81: #{tpu_custom_call.1} parent=66 // loop_exit
                  _
              $region67: #{tpu_custom_call.1} parent=51 // pred_fallthru
                _
            $region52: #{tpu_custom_call.1} parent=47 // pred_fallthru
              _
            // Predicated region
            $region53: #{tpu_custom_call.1} parent=47 // pred_check
              _
            $region54: #{tpu_custom_call.1} parent=47 // pred_check_branch
              %270 = sbr.rel (0) target = $region56
            $region55: #{tpu_custom_call.1} parent=47 // pred_region
              %s272 = ssub.s32 16, 1
              loop: start=0, step=1, limit=1
              $region57: #{tpu_custom_call.1} parent=55 // loop_pre_header
                _
              $region58: #{tpu_custom_call.1} parent=55 // loop_header
                %s274 = sphi 0, %s278
                %p275 = scmp.ge.s32.totalorder %s274, 1
                %s279 = sphi %s264, %s264
                %s280 = sphi %s261, %s261
              $region59: #{tpu_custom_call.1} parent=55 // loop_header_branch
                %277 = sbr.rel (%p275) target = $region63
              $region60: #{tpu_custom_call.1} parent=55 // loop_body
                %v281 = vld [vmem:[%s279] sm:%s272]
                %282 = vst [vmem:[%s280] sm:%s272] %v281
                %v283 = vld [vmem:[%s279 + $0x4] sm:%s272]
                %284 = vst [vmem:[%s280 + $0x4] sm:%s272] %v283
                %v285 = vld [vmem:[%s279 + $0x10] sm:%s272]
                %286 = vst [vmem:[%s280 + $0x8] sm:%s272] %v285
                %v287 = vld [vmem:[%s279 + $0x14] sm:%s272]
                %288 = vst [vmem:[%s280 + $0xc] sm:%s272] %v287
                %v289 = vld [vmem:[%s279 + $0x20] sm:%s272]
                %290 = vst [vmem:[%s280 + $0x10] sm:%s272] %v289
                %v291 = vld [vmem:[%s279 + $0x24] sm:%s272]
                %292 = vst [vmem:[%s280 + $0x14] sm:%s272] %v291
                %v293 = vld [vmem:[%s279 + $0x30] sm:%s272]
                %294 = vst [vmem:[%s280 + $0x18] sm:%s272] %v293
                %v295 = vld [vmem:[%s279 + $0x34] sm:%s272]
                %296 = vst [vmem:[%s280 + $0x1c] sm:%s272] %v295
              $region61: #{tpu_custom_call.1} parent=55 // loop_footer
                %s278 = sadd.s32 1, %s274
              $region62: #{tpu_custom_call.1} parent=55 // loop_footer_branch
                %273 = sbr.rel target = $region58
              $region63: #{tpu_custom_call.1} parent=55 // loop_exit
                _
            $region56: #{tpu_custom_call.1} parent=47 // pred_fallthru
              _
          $region48: #{tpu_custom_call.1} parent=43 // pred_fallthru
            _
          %333 = vnop
        $region44: #{tpu_custom_call.1} parent=39 // pred_fallthru
          _
      $region40: #{tpu_custom_call.1} parent=5 // pred_fallthru
        _
      %p334 = scmp.le.s32.totalorder 1, %s18
      %p335 = scmp.lt.s32.totalorder %s18, 3
      %p336 = pnand %p334, %p335
      %p337 = pneg %p336
      // Predicated region
      $region82: #{tpu_custom_call.1} parent=5 // pred_check
        _
      $region83: #{tpu_custom_call.1} parent=5 // pred_check_branch
        %339 = sbr.rel (%p336) target = $region85
      $region84: #{tpu_custom_call.1} parent=5 // pred_region
        %s340 = ssub.s32 %s18, 1
        %s341 = sand.u32 %s31, 1
        %s342 = sand.u32 %s31, 1
        %s343 = smul.addr %s342, 32
        %s344 = scalar_lea.vmem [#allocation2], %s343
        // Predicated region
        $region86: #{tpu_custom_call.1} parent=84 // pred_check
          %p345 = pneg %p44
        $region87: #{tpu_custom_call.1} parent=84 // pred_check_branch
          %347 = sbr.rel (%p345) target = $region89
        $region88: #{tpu_custom_call.1} parent=84 // pred_region
          _
        $region89: #{tpu_custom_call.1} parent=84 // pred_fallthru
          _
        // Predicated region
        $region90: #{tpu_custom_call.1} parent=84 // pred_check
          %p348 = pneg %p107
        $region91: #{tpu_custom_call.1} parent=84 // pred_check_branch
          %350 = sbr.rel (%p348) target = $region93
        $region92: #{tpu_custom_call.1} parent=84 // pred_region
          %352 = dma.done [#allocation4], 3072
        $region93: #{tpu_custom_call.1} parent=84 // pred_fallthru
          _
        // Predicated region
        $region94: #{tpu_custom_call.1} parent=84 // pred_check
          %p353 = pneg %p149
        $region95: #{tpu_custom_call.1} parent=84 // pred_check_branch
          %355 = sbr.rel (%p353) target = $region97
        $region96: #{tpu_custom_call.1} parent=84 // pred_region
          %357 = dma.done [#allocation7], 2048
        $region97: #{tpu_custom_call.1} parent=84 // pred_fallthru
          _
        %s358 = sand.u32 %s31, 1
        %s359 = sand.u32 %s31, 1
        %s360 = smul.addr %s359, 32
        %s361 = scalar_lea.vmem [#allocation2], %s360
        %p362 = pneg %p44
        %p363 = pneg %p41
        %p364 = pneg %p65
        %p365 = pneg %p62
        %p366 = pneg %p86
        %p367 = pneg %p83
        %p368 = pneg %p107
        %p369 = pneg %p104
        %p370 = pneg %p128
        %p371 = pneg %p125
        %p372 = pneg %p149
        %p373 = pneg %p146
        %p374 = pneg %p170
        %p375 = pneg %p167
        %p376 = pneg %p196
        %p377 = pneg %p193
        %s378 = sand.u32 %s183, 1
        %s379 = scalar_lea.sflag [#allocation5], %s378
        %s380 = sand.u32 %s183, 1
        %s381 = smul.addr %s380, 16
        %s382 = scalar_lea.vmem [#allocation8], %s381
        %s383 = smul.u32 2, %s23
        %s384 = smul.u32 2, %s23
        %v386 = vld [vmem:[%s344] sm:$0xf]
        %v387 = vld [vmem:[%s344 + $0x4] sm:$0xf]
        %v388 = vld [vmem:[%s344 + $0x8] sm:$0xf]
        %v389 = vld [vmem:[%s344 + $0xc] sm:$0xf]
        %v390 = vld [vmem:[%s344 + $0x10] sm:$0xf]
        %v391 = vld [vmem:[%s344 + $0x14] sm:$0xf]
        %v392 = vld [vmem:[%s344 + $0x18] sm:$0xf]
        %v393 = vld [vmem:[%s344 + $0x1c] sm:$0xf]
        %v394 = vld [vmem:[%s1] sm:$0x7]
        %v403 = vunpack.c.l.b16 %v386
        %v404 = vunpack.c.l.b16 %v387
        %v405 = vunpack.c.l.b16 %v388
        %v406 = vunpack.c.l.b16 %v389
        %v407 = vunpack.c.l.b16 %v390
        %v408 = vunpack.c.l.b16 %v391
        %v409 = vunpack.c.l.b16 %v392
        %v410 = vunpack.c.l.b16 %v393
        %v411 = vpack.c.b16 %v404, %v403
        %v412 = vpack.c.b16 %v406, %v405
        %v413 = vpack.c.b16 %v408, %v407
        %v414 = vpack.c.b16 %v410, %v409
        %vm415 = vcmask 48128
        %v417 = vsel %vm415, %v411, 0
        %v420 = vsel %vm415, %v412, 0
        %v423 = vsel %vm415, %v413, 0
        %v426 = vsel %vm415, %v414, 0
        %vm428 = vcmask 1042432
        %v430 = vsel %vm428, %v394, 0
        %432 = vmatpush.bf16.msra.mxu0 0
        %433 = vmatpush.bf16.msra.mxu0 0
        %434 = vmatpush.bf16.msra.mxu0 0
        %435 = vmatpush.bf16.msra.mxu0 0
        %436 = vmatpush.bf16.msra.mxu0 0
        %437 = vmatpush.bf16.msra.mxu0 0
        %438 = vmatpush.bf16.msra.mxu0 0
        %439 = vmatpush.bf16.msra.mxu0 %v430
        %440 = vmatmul.bf16.gmra.mxu0 %v417
        %v441 = vpop.f32.mrf.mxu0
        %v442 = vadd.f32 0.0, %v441
        %v443 = vpop.f32.mrf.mxu0
        %v444 = vadd.f32 0.0, %v443
        %445 = vmatmul.bf16.gmra.mxu0 %v420
        %v446 = vpop.f32.mrf.mxu0
        %v447 = vadd.f32 0.0, %v446
        %v448 = vpop.f32.mrf.mxu0
        %v449 = vadd.f32 0.0, %v448
        %450 = vmatmul.bf16.gmra.mxu0 %v423
        %v451 = vpop.f32.mrf.mxu0
        %v452 = vadd.f32 0.0, %v451
        %v453 = vpop.f32.mrf.mxu0
        %v454 = vadd.f32 0.0, %v453
        %455 = vmatmul.bf16.gmra.mxu0 %v426
        %v456 = vpop.f32.mrf.mxu0
        %v457 = vadd.f32 0.0, %v456
        %v458 = vpop.f32.mrf.mxu0
        %v459 = vadd.f32 0.0, %v458
        %460 = vdwg.mxu0
        %v461 = vld [vmem:[%s2] sm:$0x1]
        %v462 = vld [vmem:[%s2 + $0x1] sm:$0x1]
        %v463 = vld [vmem:[%s2 + $0x2] sm:$0x1]
        %v464 = vld [vmem:[%s2 + $0x3] sm:$0x1]
        %v469 = vperm.slane %v461, 0
        %v470 = vperm.slane %v462, 0
        %v471 = vperm.slane %v463, 0
        %v472 = vperm.slane %v464, 0
        %v477 = vadd.f32 %v442, %v469
        %v478 = vadd.f32 %v444, %v469
        %v479 = vadd.f32 %v447, %v470
        %v480 = vadd.f32 %v449, %v470
        %v481 = vadd.f32 %v452, %v471
        %v482 = vadd.f32 %v454, %v471
        %v483 = vadd.f32 %v457, %v472
        %v484 = vadd.f32 %v459, %v472
        %v485 = vmax.f32 %v477, 0.0
        %v486 = vmax.f32 %v478, 0.0
        %v487 = vmax.f32 %v479, 0.0
        %v488 = vmax.f32 %v480, 0.0
        %v489 = vmax.f32 %v481, 0.0
        %v490 = vmax.f32 %v482, 0.0
        %v491 = vmax.f32 %v483, 0.0
        %v492 = vmax.f32 %v484, 0.0
        %v493 = vpack.c.bf16 %v485, %v485
        %v494 = vpack.c.bf16 %v486, %v486
        %v495 = vpack.c.bf16 %v487, %v487
        %v496 = vpack.c.bf16 %v488, %v488
        %v497 = vpack.c.bf16 %v489, %v489
        %v498 = vpack.c.bf16 %v490, %v490
        %v499 = vpack.c.bf16 %v491, %v491
        %v500 = vpack.c.bf16 %v492, %v492
        %v501 = vld [vmem:[#allocation3] sm:$0xff]
        %v502 = vld [vmem:[#allocation3 + $0x8] sm:$0xff]
        %v503 = vld [vmem:[#allocation3 + $0x10] sm:$0xff]
        %v504 = vld [vmem:[#allocation3 + $0x18] sm:$0xff]
        %v505 = vld [vmem:[#allocation3 + $0x20] sm:$0xff]
        %v506 = vld [vmem:[#allocation3 + $0x28] sm:$0xff]
        %v507 = vld [vmem:[#allocation3 + $0x30] sm:$0xff]
        %v508 = vld [vmem:[#allocation3 + $0x38] sm:$0xff]
        %s509 = scalar_lea.vmem [#allocation3], 64
        %v510 = vld [vmem:[%s509] sm:$0xff]
        %v511 = vld [vmem:[%s509 + $0x8] sm:$0xff]
        %v512 = vld [vmem:[%s509 + $0x10] sm:$0xff]
        %v513 = vld [vmem:[%s509 + $0x18] sm:$0xff]
        %v514 = vld [vmem:[%s509 + $0x20] sm:$0xff]
        %v515 = vld [vmem:[%s509 + $0x28] sm:$0xff]
        %v516 = vld [vmem:[%s509 + $0x30] sm:$0xff]
        %v517 = vld [vmem:[%s509 + $0x38] sm:$0xff]
        %s518 = scalar_lea.vmem [#allocation3], 128
        %v519 = vld [vmem:[%s518] sm:$0xff]
        %v520 = vld [vmem:[%s518 + $0x8] sm:$0xff]
        %v521 = vld [vmem:[%s518 + $0x10] sm:$0xff]
        %v522 = vld [vmem:[%s518 + $0x18] sm:$0xff]
        %v523 = vld [vmem:[%s518 + $0x20] sm:$0xff]
        %v524 = vld [vmem:[%s518 + $0x28] sm:$0xff]
        %v525 = vld [vmem:[%s518 + $0x30] sm:$0xff]
        %v526 = vld [vmem:[%s518 + $0x38] sm:$0xff]
        %v529 = vunpack.c.l.b16 %v495
        %v530 = vunpack.c.l.b16 %v496
        %v531 = vpack.c.b16 %v530, %v529
        %v540 = vunpack.c.l.b16 %v519
        %v541 = vunpack.c.h.b16 %v519
        %v542 = vunpack.c.l.b16 %v520
        %v543 = vunpack.c.h.b16 %v520
        %v544 = vunpack.c.l.b16 %v521
        %v545 = vunpack.c.h.b16 %v521
        %v546 = vunpack.c.l.b16 %v522
        %v547 = vunpack.c.h.b16 %v522
        %v548 = vunpack.c.l.b16 %v523
        %v549 = vunpack.c.h.b16 %v523
        %v550 = vunpack.c.l.b16 %v524
        %v551 = vunpack.c.h.b16 %v524
        %v552 = vunpack.c.l.b16 %v525
        %v553 = vunpack.c.h.b16 %v525
        %v554 = vunpack.c.l.b16 %v526
        %v555 = vunpack.c.h.b16 %v526
        %v556 = vpack.c.b16 %v542, %v540
        %v557 = vpack.c.b16 %v543, %v541
        %v558 = vpack.c.b16 %v546, %v544
        %v559 = vpack.c.b16 %v547, %v545
        %v560 = vpack.c.b16 %v550, %v548
        %v561 = vpack.c.b16 %v551, %v549
        %v562 = vpack.c.b16 %v554, %v552
        %v563 = vpack.c.b16 %v555, %v553
        %vm572 = vcmask 523264
        %v574 = vsel %vm572, %v531, 0
        %576 = vmatpush.bf16.msra.mxu0 0
        %577 = vmatpush.bf16.msra.mxu0 0
        %578 = vmatpush.bf16.msra.mxu0 0
        %579 = vmatpush.bf16.msra.mxu0 0
        %580 = vmatpush.bf16.msra.mxu0 %v562
        %581 = vmatpush.bf16.msra.mxu0 %v560
        %582 = vmatpush.bf16.msra.mxu0 %v558
        %583 = vmatpush.bf16.msra.mxu0 %v556
        %584 = vmatmul.bf16.gmra.mxu0 %v574
        %v585 = vpop.f32.mrf.mxu0
        %v586 = vadd.f32 0.0, %v585
        %v587 = vpop.f32.mrf.mxu0
        %v588 = vadd.f32 0.0, %v587
        %589 = vdwg.mxu0
        %590 = vmatpush.bf16.msra.mxu0 0
        %591 = vmatpush.bf16.msra.mxu0 0
        %592 = vmatpush.bf16.msra.mxu0 0
        %593 = vmatpush.bf16.msra.mxu0 0
        %594 = vmatpush.bf16.msra.mxu0 %v563
        %595 = vmatpush.bf16.msra.mxu0 %v561
        %596 = vmatpush.bf16.msra.mxu0 %v559
        %597 = vmatpush.bf16.msra.mxu0 %v557
        %598 = vmatmul.bf16.gmra.mxu0 %v574
        %v599 = vpop.f32.mrf.mxu0
        %v600 = vadd.f32 0.0, %v599
        %v601 = vpop.f32.mrf.mxu0
        %v602 = vadd.f32 0.0, %v601
        %603 = vdwg.mxu0
        %v606 = vunpack.c.l.b16 %v493
        %v607 = vunpack.c.l.b16 %v494
        %v608 = vpack.c.b16 %v607, %v606
        %v617 = vunpack.c.l.b16 %v510
        %v618 = vunpack.c.h.b16 %v510
        %v619 = vunpack.c.l.b16 %v511
        %v620 = vunpack.c.h.b16 %v511
        %v621 = vunpack.c.l.b16 %v512
        %v622 = vunpack.c.h.b16 %v512
        %v623 = vunpack.c.l.b16 %v513
        %v624 = vunpack.c.h.b16 %v513
        %v625 = vunpack.c.l.b16 %v514
        %v626 = vunpack.c.h.b16 %v514
        %v627 = vunpack.c.l.b16 %v515
        %v628 = vunpack.c.h.b16 %v515
        %v629 = vunpack.c.l.b16 %v516
        %v630 = vunpack.c.h.b16 %v516
        %v631 = vunpack.c.l.b16 %v517
        %v632 = vunpack.c.h.b16 %v517
        %v633 = vpack.c.b16 %v619, %v617
        %v634 = vpack.c.b16 %v620, %v618
        %v635 = vpack.c.b16 %v623, %v621
        %v636 = vpack.c.b16 %v624, %v622
        %v637 = vpack.c.b16 %v627, %v625
        %v638 = vpack.c.b16 %v628, %v626
        %v639 = vpack.c.b16 %v631, %v629
        %v640 = vpack.c.b16 %v632, %v630
        %v650 = vsel %vm572, %v608, 0
        %652 = vmatpush.bf16.msra.mxu0 0
        %653 = vmatpush.bf16.msra.mxu0 0
        %654 = vmatpush.bf16.msra.mxu0 0
        %655 = vmatpush.bf16.msra.mxu0 0
        %656 = vmatpush.bf16.msra.mxu0 %v639
        %657 = vmatpush.bf16.msra.mxu0 %v637
        %658 = vmatpush.bf16.msra.mxu0 %v635
        %659 = vmatpush.bf16.msra.mxu0 %v633
        %660 = vmatmul.bf16.gmra.mxu0 %v650
        %v661 = vpop.f32.mrf.mxu0
        %v662 = vadd.f32 %v586, %v661
        %v663 = vpop.f32.mrf.mxu0
        %v664 = vadd.f32 %v588, %v663
        %665 = vdwg.mxu0
        %666 = vmatpush.bf16.msra.mxu0 0
        %667 = vmatpush.bf16.msra.mxu0 0
        %668 = vmatpush.bf16.msra.mxu0 0
        %669 = vmatpush.bf16.msra.mxu0 0
        %670 = vmatpush.bf16.msra.mxu0 %v640
        %671 = vmatpush.bf16.msra.mxu0 %v638
        %672 = vmatpush.bf16.msra.mxu0 %v636
        %673 = vmatpush.bf16.msra.mxu0 %v634
        %674 = vmatmul.bf16.gmra.mxu0 %v650
        %v675 = vpop.f32.mrf.mxu0
        %v676 = vadd.f32 %v600, %v675
        %v677 = vpop.f32.mrf.mxu0
        %v678 = vadd.f32 %v602, %v677
        %679 = vdwg.mxu0
        %v688 = vunpack.c.l.b16 %v501
        %v689 = vunpack.c.h.b16 %v501
        %v690 = vunpack.c.l.b16 %v502
        %v691 = vunpack.c.h.b16 %v502
        %v692 = vunpack.c.l.b16 %v503
        %v693 = vunpack.c.h.b16 %v503
        %v694 = vunpack.c.l.b16 %v504
        %v695 = vunpack.c.h.b16 %v504
        %v696 = vunpack.c.l.b16 %v505
        %v697 = vunpack.c.h.b16 %v505
        %v698 = vunpack.c.l.b16 %v506
        %v699 = vunpack.c.h.b16 %v506
        %v700 = vunpack.c.l.b16 %v507
        %v701 = vunpack.c.h.b16 %v507
        %v702 = vunpack.c.l.b16 %v508
        %v703 = vunpack.c.h.b16 %v508
        %v704 = vpack.c.b16 %v690, %v688
        %v705 = vpack.c.b16 %v691, %v689
        %v706 = vpack.c.b16 %v694, %v692
        %v707 = vpack.c.b16 %v695, %v693
        %v708 = vpack.c.b16 %v698, %v696
        %v709 = vpack.c.b16 %v699, %v697
        %v710 = vpack.c.b16 %v702, %v700
        %v711 = vpack.c.b16 %v703, %v701
        %720 = vmatpush.bf16.msra.mxu0 0
        %721 = vmatpush.bf16.msra.mxu0 0
        %722 = vmatpush.bf16.msra.mxu0 0
        %723 = vmatpush.bf16.msra.mxu0 0
        %724 = vmatpush.bf16.msra.mxu0 %v710
        %725 = vmatpush.bf16.msra.mxu0 %v708
        %726 = vmatpush.bf16.msra.mxu0 %v706
        %727 = vmatpush.bf16.msra.mxu0 %v704
        %728 = vmatmul.bf16.gmra.mxu0 %v650
        %v729 = vpop.f32.mrf.mxu0
        %v730 = vadd.f32 0.0, %v729
        %v731 = vpop.f32.mrf.mxu0
        %v732 = vadd.f32 0.0, %v731
        %733 = vdwg.mxu0
        %734 = vmatpush.bf16.msra.mxu0 0
        %735 = vmatpush.bf16.msra.mxu0 0
        %736 = vmatpush.bf16.msra.mxu0 0
        %737 = vmatpush.bf16.msra.mxu0 0
        %738 = vmatpush.bf16.msra.mxu0 %v711
        %739 = vmatpush.bf16.msra.mxu0 %v709
        %740 = vmatpush.bf16.msra.mxu0 %v707
        %741 = vmatpush.bf16.msra.mxu0 %v705
        %742 = vmatmul.bf16.gmra.mxu0 %v650
        %v743 = vpop.f32.mrf.mxu0
        %v744 = vadd.f32 0.0, %v743
        %v745 = vpop.f32.mrf.mxu0
        %v746 = vadd.f32 0.0, %v745
        %747 = vdwg.mxu0
        %748 = vmatpush.bf16.msra.mxu0 0
        %749 = vmatpush.bf16.msra.mxu0 0
        %750 = vmatpush.bf16.msra.mxu0 0
        %751 = vmatpush.bf16.msra.mxu0 0
        %752 = vmatpush.bf16.msra.mxu0 %v639
        %753 = vmatpush.bf16.msra.mxu0 %v637
        %754 = vmatpush.bf16.msra.mxu0 %v635
        %755 = vmatpush.bf16.msra.mxu0 %v633
        %756 = vmatmul.bf16.gmra.mxu0 %v574
        %v757 = vpop.f32.mrf.mxu0
        %v758 = vadd.f32 %v730, %v757
        %v759 = vpop.f32.mrf.mxu0
        %v760 = vadd.f32 %v732, %v759
        %761 = vdwg.mxu0
        %762 = vmatpush.bf16.msra.mxu0 0
        %763 = vmatpush.bf16.msra.mxu0 0
        %764 = vmatpush.bf16.msra.mxu0 0
        %765 = vmatpush.bf16.msra.mxu0 0
        %766 = vmatpush.bf16.msra.mxu0 %v640
        %767 = vmatpush.bf16.msra.mxu0 %v638
        %768 = vmatpush.bf16.msra.mxu0 %v636
        %769 = vmatpush.bf16.msra.mxu0 %v634
        %770 = vmatmul.bf16.gmra.mxu0 %v574
        %v771 = vpop.f32.mrf.mxu0
        %v772 = vadd.f32 %v744, %v771
        %v773 = vpop.f32.mrf.mxu0
        %v774 = vadd.f32 %v746, %v773
        %775 = vdwg.mxu0
        %v778 = vunpack.c.l.b16 %v497
        %v779 = vunpack.c.l.b16 %v498
        %v780 = vpack.c.b16 %v779, %v778
        %v782 = vsel %vm572, %v780, 0
        %784 = vmatpush.bf16.msra.mxu0 0
        %785 = vmatpush.bf16.msra.mxu0 0
        %786 = vmatpush.bf16.msra.mxu0 0
        %787 = vmatpush.bf16.msra.mxu0 0
        %788 = vmatpush.bf16.msra.mxu0 %v562
        %789 = vmatpush.bf16.msra.mxu0 %v560
        %790 = vmatpush.bf16.msra.mxu0 %v558
        %791 = vmatpush.bf16.msra.mxu0 %v556
        %792 = vmatmul.bf16.gmra.mxu0 %v782
        %v793 = vpop.f32.mrf.mxu0
        %v794 = vadd.f32 0.0, %v793
        %v795 = vpop.f32.mrf.mxu0
        %v796 = vadd.f32 0.0, %v795
        %797 = vdwg.mxu0
        %798 = vmatpush.bf16.msra.mxu0 0
        %799 = vmatpush.bf16.msra.mxu0 0
        %800 = vmatpush.bf16.msra.mxu0 0
        %801 = vmatpush.bf16.msra.mxu0 0
        %802 = vmatpush.bf16.msra.mxu0 %v563
        %803 = vmatpush.bf16.msra.mxu0 %v561
        %804 = vmatpush.bf16.msra.mxu0 %v559
        %805 = vmatpush.bf16.msra.mxu0 %v557
        %806 = vmatmul.bf16.gmra.mxu0 %v782
        %v807 = vpop.f32.mrf.mxu0
        %v808 = vadd.f32 0.0, %v807
        %v809 = vpop.f32.mrf.mxu0
        %v810 = vadd.f32 0.0, %v809
        %811 = vdwg.mxu0
        %v812 = vadd.f32 %v758, %v794
        %v813 = vadd.f32 %v772, %v808
        %v814 = vadd.f32 %v760, %v796
        %v815 = vadd.f32 %v774, %v810
        %v816 = vmax.f32 %v662, %v812
        %v817 = vmax.f32 %v676, %v813
        %v818 = vmax.f32 %v664, %v814
        %v819 = vmax.f32 %v678, %v815
        %820 = vmatpush.bf16.msra.mxu0 0
        %821 = vmatpush.bf16.msra.mxu0 0
        %822 = vmatpush.bf16.msra.mxu0 0
        %823 = vmatpush.bf16.msra.mxu0 0
        %824 = vmatpush.bf16.msra.mxu0 %v710
        %825 = vmatpush.bf16.msra.mxu0 %v708
        %826 = vmatpush.bf16.msra.mxu0 %v706
        %827 = vmatpush.bf16.msra.mxu0 %v704
        %828 = vmatmul.bf16.gmra.mxu0 %v574
        %v829 = vpop.f32.mrf.mxu0
        %v830 = vadd.f32 0.0, %v829
        %v831 = vpop.f32.mrf.mxu0
        %v832 = vadd.f32 0.0, %v831
        %833 = vdwg.mxu0
        %834 = vmatpush.bf16.msra.mxu0 0
        %835 = vmatpush.bf16.msra.mxu0 0
        %836 = vmatpush.bf16.msra.mxu0 0
        %837 = vmatpush.bf16.msra.mxu0 0
        %838 = vmatpush.bf16.msra.mxu0 %v711
        %839 = vmatpush.bf16.msra.mxu0 %v709
        %840 = vmatpush.bf16.msra.mxu0 %v707
        %841 = vmatpush.bf16.msra.mxu0 %v705
        %842 = vmatmul.bf16.gmra.mxu0 %v574
        %v843 = vpop.f32.mrf.mxu0
        %v844 = vadd.f32 0.0, %v843
        %v845 = vpop.f32.mrf.mxu0
        %v846 = vadd.f32 0.0, %v845
        %847 = vdwg.mxu0
        %848 = vmatpush.bf16.msra.mxu0 0
        %849 = vmatpush.bf16.msra.mxu0 0
        %850 = vmatpush.bf16.msra.mxu0 0
        %851 = vmatpush.bf16.msra.mxu0 0
        %852 = vmatpush.bf16.msra.mxu0 %v639
        %853 = vmatpush.bf16.msra.mxu0 %v637
        %854 = vmatpush.bf16.msra.mxu0 %v635
        %855 = vmatpush.bf16.msra.mxu0 %v633
        %856 = vmatmul.bf16.gmra.mxu0 %v782
        %v857 = vpop.f32.mrf.mxu0
        %v858 = vadd.f32 %v830, %v857
        %v859 = vpop.f32.mrf.mxu0
        %v860 = vadd.f32 %v832, %v859
        %861 = vdwg.mxu0
        %862 = vmatpush.bf16.msra.mxu0 0
        %863 = vmatpush.bf16.msra.mxu0 0
        %864 = vmatpush.bf16.msra.mxu0 0
        %865 = vmatpush.bf16.msra.mxu0 0
        %866 = vmatpush.bf16.msra.mxu0 %v640
        %867 = vmatpush.bf16.msra.mxu0 %v638
        %868 = vmatpush.bf16.msra.mxu0 %v636
        %869 = vmatpush.bf16.msra.mxu0 %v634
        %870 = vmatmul.bf16.gmra.mxu0 %v782
        %v871 = vpop.f32.mrf.mxu0
        %v872 = vadd.f32 %v844, %v871
        %v873 = vpop.f32.mrf.mxu0
        %v874 = vadd.f32 %v846, %v873
        %875 = vdwg.mxu0
        %v878 = vunpack.c.l.b16 %v499
        %v879 = vunpack.c.l.b16 %v500
        %v880 = vpack.c.b16 %v879, %v878
        %v882 = vsel %vm572, %v880, 0
        %884 = vmatpush.bf16.msra.mxu0 0
        %885 = vmatpush.bf16.msra.mxu0 0
        %886 = vmatpush.bf16.msra.mxu0 0
        %887 = vmatpush.bf16.msra.mxu0 0
        %888 = vmatpush.bf16.msra.mxu0 %v562
        %889 = vmatpush.bf16.msra.mxu0 %v560
        %890 = vmatpush.bf16.msra.mxu0 %v558
        %891 = vmatpush.bf16.msra.mxu0 %v556
        %892 = vmatmul.bf16.gmra.mxu0 %v882
        %v893 = vpop.f32.mrf.mxu0
        %v894 = vadd.f32 0.0, %v893
        %v895 = vpop.f32.mrf.mxu0
        %v896 = vadd.f32 0.0, %v895
        %897 = vdwg.mxu0
        %898 = vmatpush.bf16.msra.mxu0 0
        %899 = vmatpush.bf16.msra.mxu0 0
        %900 = vmatpush.bf16.msra.mxu0 0
        %901 = vmatpush.bf16.msra.mxu0 0
        %902 = vmatpush.bf16.msra.mxu0 %v563
        %903 = vmatpush.bf16.msra.mxu0 %v561
        %904 = vmatpush.bf16.msra.mxu0 %v559
        %905 = vmatpush.bf16.msra.mxu0 %v557
        %906 = vmatmul.bf16.gmra.mxu0 %v882
        %v907 = vpop.f32.mrf.mxu0
        %v908 = vadd.f32 0.0, %v907
        %v909 = vpop.f32.mrf.mxu0
        %v910 = vadd.f32 0.0, %v909
        %911 = vdwg.mxu0
        %v912 = vadd.f32 %v858, %v894
        %v913 = vadd.f32 %v872, %v908
        %v914 = vadd.f32 %v860, %v896
        %v915 = vadd.f32 %v874, %v910
        %v916 = vmax.f32 %v816, %v912
        %v917 = vmax.f32 %v817, %v913
        %v918 = vmax.f32 %v818, %v914
        %v919 = vmax.f32 %v819, %v915
        %920 = vmatpush.bf16.msra.mxu0 0
        %921 = vmatpush.bf16.msra.mxu0 0
        %922 = vmatpush.bf16.msra.mxu0 0
        %923 = vmatpush.bf16.msra.mxu0 0
        %924 = vmatpush.bf16.msra.mxu0 %v710
        %925 = vmatpush.bf16.msra.mxu0 %v708
        %926 = vmatpush.bf16.msra.mxu0 %v706
        %927 = vmatpush.bf16.msra.mxu0 %v704
        %928 = vmatmul.bf16.gmra.mxu0 %v782
        %v929 = vpop.f32.mrf.mxu0
        %v930 = vadd.f32 0.0, %v929
        %v931 = vpop.f32.mrf.mxu0
        %v932 = vadd.f32 0.0, %v931
        %933 = vdwg.mxu0
        %934 = vmatpush.bf16.msra.mxu0 0
        %935 = vmatpush.bf16.msra.mxu0 0
        %936 = vmatpush.bf16.msra.mxu0 0
        %937 = vmatpush.bf16.msra.mxu0 0
        %938 = vmatpush.bf16.msra.mxu0 %v711
        %939 = vmatpush.bf16.msra.mxu0 %v709
        %940 = vmatpush.bf16.msra.mxu0 %v707
        %941 = vmatpush.bf16.msra.mxu0 %v705
        %942 = vmatmul.bf16.gmra.mxu0 %v782
        %v943 = vpop.f32.mrf.mxu0
        %v944 = vadd.f32 0.0, %v943
        %v945 = vpop.f32.mrf.mxu0
        %v946 = vadd.f32 0.0, %v945
        %947 = vdwg.mxu0
        %948 = vmatpush.bf16.msra.mxu0 0
        %949 = vmatpush.bf16.msra.mxu0 0
        %950 = vmatpush.bf16.msra.mxu0 0
        %951 = vmatpush.bf16.msra.mxu0 0
        %952 = vmatpush.bf16.msra.mxu0 %v639
        %953 = vmatpush.bf16.msra.mxu0 %v637
        %954 = vmatpush.bf16.msra.mxu0 %v635
        %955 = vmatpush.bf16.msra.mxu0 %v633
        %956 = vmatmul.bf16.gmra.mxu0 %v882
        %v957 = vpop.f32.mrf.mxu0
        %v958 = vadd.f32 %v930, %v957
        %v959 = vpop.f32.mrf.mxu0
        %v960 = vadd.f32 %v932, %v959
        %961 = vdwg.mxu0
        %962 = vmatpush.bf16.msra.mxu0 0
        %963 = vmatpush.bf16.msra.mxu0 0
        %964 = vmatpush.bf16.msra.mxu0 0
        %965 = vmatpush.bf16.msra.mxu0 0
        %966 = vmatpush.bf16.msra.mxu0 %v640
        %967 = vmatpush.bf16.msra.mxu0 %v638
        %968 = vmatpush.bf16.msra.mxu0 %v636
        %969 = vmatpush.bf16.msra.mxu0 %v634
        %970 = vmatmul.bf16.gmra.mxu0 %v882
        %v971 = vpop.f32.mrf.mxu0
        %v972 = vadd.f32 %v944, %v971
        %v973 = vpop.f32.mrf.mxu0
        %v974 = vadd.f32 %v946, %v973
        %975 = vdwg.mxu0
        %v976 = vmax.f32 %v916, %v958
        %v977 = vmax.f32 %v917, %v972
        %v978 = vmax.f32 %v918, %v960
        %v979 = vmax.f32 %v919, %v974
        %v980 = vld [vmem:[%s4] sm:$0x3]
        %v982 = vperm.slane %v980, 0
        %v983 = vperm.slane %v980, 1
        %v986 = vadd.f32 %v976, %v982
        %v987 = vadd.f32 %v977, %v983
        %v988 = vadd.f32 %v978, %v982
        %v989 = vadd.f32 %v979, %v983
        %v990 = vmax.f32 %v986, 0.0
        %v991 = vmax.f32 %v987, 0.0
        %v992 = vmax.f32 %v988, 0.0
        %v993 = vmax.f32 %v989, 0.0
        %v994 = vpack.c.bf16 %v992, %v990
        %v995 = vpack.c.bf16 %v993, %v991
        %v996 = vld [vmem:[#allocation6] sm:$0xf]
        %v997 = vld [vmem:[#allocation6 + $0x4] sm:$0xf]
        %v998 = vld [vmem:[#allocation6 + $0x8] sm:$0xf]
        %v999 = vld [vmem:[#allocation6 + $0xc] sm:$0xf]
        %v1000 = vld [vmem:[#allocation6 + $0x10] sm:$0xf]
        %v1001 = vld [vmem:[#allocation6 + $0x14] sm:$0xf]
        %v1002 = vld [vmem:[#allocation6 + $0x18] sm:$0xf]
        %v1003 = vld [vmem:[#allocation6 + $0x1c] sm:$0xf]
        %v1004 = vld [vmem:[#allocation6 + $0x20] sm:$0xf]
        %v1005 = vld [vmem:[#allocation6 + $0x24] sm:$0xf]
        %v1006 = vld [vmem:[#allocation6 + $0x28] sm:$0xf]
        %v1007 = vld [vmem:[#allocation6 + $0x2c] sm:$0xf]
        %v1008 = vld [vmem:[#allocation6 + $0x30] sm:$0xf]
        %v1009 = vld [vmem:[#allocation6 + $0x34] sm:$0xf]
        %v1010 = vld [vmem:[#allocation6 + $0x38] sm:$0xf]
        %v1011 = vld [vmem:[#allocation6 + $0x3c] sm:$0xf]
        %v1012 = vld [vmem:[#allocation6 + $0x40] sm:$0xf]
        %v1013 = vld [vmem:[#allocation6 + $0x44] sm:$0xf]
        %v1014 = vld [vmem:[#allocation6 + $0x48] sm:$0xf]
        %v1015 = vld [vmem:[#allocation6 + $0x4c] sm:$0xf]
        %v1016 = vld [vmem:[#allocation6 + $0x50] sm:$0xf]
        %v1017 = vld [vmem:[#allocation6 + $0x54] sm:$0xf]
        %v1018 = vld [vmem:[#allocation6 + $0x58] sm:$0xf]
        %v1019 = vld [vmem:[#allocation6 + $0x5c] sm:$0xf]
        %v1020 = vld [vmem:[#allocation6 + $0x60] sm:$0xf]
        %v1021 = vld [vmem:[#allocation6 + $0x64] sm:$0xf]
        %v1022 = vld [vmem:[#allocation6 + $0x68] sm:$0xf]
        %v1023 = vld [vmem:[#allocation6 + $0x6c] sm:$0xf]
        %v1024 = vld [vmem:[#allocation6 + $0x70] sm:$0xf]
        %v1025 = vld [vmem:[#allocation6 + $0x74] sm:$0xf]
        %v1026 = vld [vmem:[#allocation6 + $0x78] sm:$0xf]
        %v1027 = vld [vmem:[#allocation6 + $0x7c] sm:$0xf]
        %v1028 = vld [vmem:[%s6] sm:$0x1]
        %v1030 = vperm.slane %v1028, 0
        %v1064 = vunpack.c.l.b16 %v996
        %v1065 = vunpack.c.l.b16 %v997
        %v1066 = vunpack.c.l.b16 %v998
        %v1067 = vunpack.c.l.b16 %v999
        %v1068 = vunpack.c.l.b16 %v1000
        %v1069 = vunpack.c.l.b16 %v1001
        %v1070 = vunpack.c.l.b16 %v1002
        %v1071 = vunpack.c.l.b16 %v1003
        %v1072 = vunpack.c.l.b16 %v1004
        %v1073 = vunpack.c.l.b16 %v1005
        %v1074 = vunpack.c.l.b16 %v1006
        %v1075 = vunpack.c.l.b16 %v1007
        %v1076 = vunpack.c.l.b16 %v1008
        %v1077 = vunpack.c.l.b16 %v1009
        %v1078 = vunpack.c.l.b16 %v1010
        %v1079 = vunpack.c.l.b16 %v1011
        %v1080 = vunpack.c.l.b16 %v1012
        %v1081 = vunpack.c.l.b16 %v1013
        %v1082 = vunpack.c.l.b16 %v1014
        %v1083 = vunpack.c.l.b16 %v1015
        %v1084 = vunpack.c.l.b16 %v1016
        %v1085 = vunpack.c.l.b16 %v1017
        %v1086 = vunpack.c.l.b16 %v1018
        %v1087 = vunpack.c.l.b16 %v1019
        %v1088 = vunpack.c.l.b16 %v1020
        %v1089 = vunpack.c.l.b16 %v1021
        %v1090 = vunpack.c.l.b16 %v1022
        %v1091 = vunpack.c.l.b16 %v1023
        %v1092 = vunpack.c.l.b16 %v1024
        %v1093 = vunpack.c.l.b16 %v1025
        %v1094 = vunpack.c.l.b16 %v1026
        %v1095 = vunpack.c.l.b16 %v1027
        %v1096 = vpack.c.b16 %v1065, %v1064
        %v1097 = vpack.c.b16 %v1067, %v1066
        %v1098 = vpack.c.b16 %v1069, %v1068
        %v1099 = vpack.c.b16 %v1071, %v1070
        %v1100 = vpack.c.b16 %v1073, %v1072
        %v1101 = vpack.c.b16 %v1075, %v1074
        %v1102 = vpack.c.b16 %v1077, %v1076
        %v1103 = vpack.c.b16 %v1079, %v1078
        %v1104 = vpack.c.b16 %v1081, %v1080
        %v1105 = vpack.c.b16 %v1083, %v1082
        %v1106 = vpack.c.b16 %v1085, %v1084
        %v1107 = vpack.c.b16 %v1087, %v1086
        %v1108 = vpack.c.b16 %v1089, %v1088
        %v1109 = vpack.c.b16 %v1091, %v1090
        %v1110 = vpack.c.b16 %v1093, %v1092
        %v1111 = vpack.c.b16 %v1095, %v1094
        %1128 = vmatpush.bf16.msra.mxu0 %v1103
        %1129 = vmatpush.bf16.msra.mxu0 %v1102
        %1130 = vmatpush.bf16.msra.mxu0 %v1101
        %1131 = vmatpush.bf16.msra.mxu0 %v1100
        %1132 = vmatpush.bf16.msra.mxu0 %v1099
        %1133 = vmatpush.bf16.msra.mxu0 %v1098
        %1134 = vmatpush.bf16.msra.mxu0 %v1097
        %1135 = vmatpush.bf16.msra.mxu0 %v1096
        %1136 = vmatmul.bf16.gmra.mxu0 %v994
        %v1137 = vpop.f32.mrf.mxu0
        %v1138 = vadd.f32 %v1030, %v1137
        %v1139 = vpop.f32.mrf.mxu0
        %v1140 = vadd.f32 %v1030, %v1139
        %1141 = vdwg.mxu0
        %1142 = vmatpush.bf16.msra.mxu0 %v1111
        %1143 = vmatpush.bf16.msra.mxu0 %v1110
        %1144 = vmatpush.bf16.msra.mxu0 %v1109
        %1145 = vmatpush.bf16.msra.mxu0 %v1108
        %1146 = vmatpush.bf16.msra.mxu0 %v1107
        %1147 = vmatpush.bf16.msra.mxu0 %v1106
        %1148 = vmatpush.bf16.msra.mxu0 %v1105
        %1149 = vmatpush.bf16.msra.mxu0 %v1104
        %1150 = vmatmul.bf16.gmra.mxu0 %v995
        %v1151 = vpop.f32.mrf.mxu0
        %v1152 = vadd.f32 %v1138, %v1151
        %v1153 = vpop.f32.mrf.mxu0
        %v1154 = vadd.f32 %v1140, %v1153
        %1155 = vdwg.mxu0
        %1156 = vst [vmem:[%s382] sm:$0xff] %v1152
        %1157 = vst [vmem:[%s382 + $0x8] sm:$0xff] %v1154
        %s1158 = sand.u32 %s183, 1
        %s1159 = scalar_lea.sflag [#allocation5], %s1158
        %s1160 = sand.u32 %s183, 1
        %s1161 = smul.addr %s1160, 16
        %s1162 = scalar_lea.vmem [#allocation8], %s1161
        // Predicated region
        $region98: #{tpu_custom_call.1} parent=84 // pred_check
          %p1163 = pneg %p193
        $region99: #{tpu_custom_call.1} parent=84 // pred_check_branch
          %1165 = sbr.rel (%p1163) target = $region101
        $region100: #{tpu_custom_call.1} parent=84 // pred_region
          %s1166 = smul.u32 2, %s23
          %1168 = vsyncadd %s1159, 0
          %s1169 = smul.addr %s1166, 8
          %s1170 = scalar_lea.hbm %s7, %s1169
          %s1171 = sshll.u32 %s1162, 4
          %s1172 = int_to_ptr.vmem [resolvable:$true] %s1171
          %s1173 = sshll.u32 %s1170, 4
          %s1174 = int_to_ptr.hbm [resolvable:$true] %s1173
          %1179 = dma.vmem_to_hbm [thread:$0]  %s1172, 256, %s1174, %s1159, 128, 128, 8
        $region101: #{tpu_custom_call.1} parent=84 // pred_fallthru
          _
      $region85: #{tpu_custom_call.1} parent=5 // pred_fallthru
        _
      %p1180 = scmp.le.s32.totalorder 2, %s18
      // Predicated region
      $region102: #{tpu_custom_call.1} parent=5 // pred_check
        %p1181 = pneg %p1180
      $region103: #{tpu_custom_call.1} parent=5 // pred_check_branch
        %1183 = sbr.rel (%p1181) target = $region105
      $region104: #{tpu_custom_call.1} parent=5 // pred_region
        %s1184 = ssub.s32 %s18, 2
        // Predicated region
        $region106: #{tpu_custom_call.1} parent=104 // pred_check
          %p1185 = pneg %p199
        $region107: #{tpu_custom_call.1} parent=104 // pred_check_branch
          %1187 = sbr.rel (%p1185) target = $region109
        $region108: #{tpu_custom_call.1} parent=104 // pred_region
          %s1188 = sand.u32 %s184, 1
          %s1189 = scalar_lea.sflag [#allocation5], %s1188
          %s1190 = sand.u32 %s184, 1
          %s1191 = smul.addr %s1190, 16
          %s1192 = scalar_lea.vmem [#allocation8], %s1191
          %1194 = dma.done %s1189, 256
        $region109: #{tpu_custom_call.1} parent=104 // pred_fallthru
          _
      $region105: #{tpu_custom_call.1} parent=5 // pred_fallthru
        _
    $region6: #{tpu_custom_call.1} parent=1 // loop_footer
      %s22 = sadd.s32 1, %s18
    $region7: #{tpu_custom_call.1} parent=1 // loop_footer_branch
      %17 = sbr.rel target = $region3
    $region8: #{tpu_custom_call.1} parent=1 // loop_exit
      _
    %1195 = vsyncpa [#allocation4], 1
    %s1196 = scalar_lea.sflag [#allocation4], 1
    %1197 = vsyncpa %s1196, 1
    %1198 = vsyncpa [#allocation7], 1
    %1199 = vsyncpa [#allocation5], 1
    %s1200 = scalar_lea.sflag [#allocation5], 1
    %1201 = vsyncpa %s1200, 1

</llo_original>
